<compile_context>
chip_gen: v7x
topology: tpu7x:2x2x1
jax: 0.10.0
libtpu: 0.0.40
codegen_flags: <defaults>
</compile_context>

<pallas_src>
import functools

import jax
import jax.numpy as jnp
from jax.experimental import pallas as pl
from jax.experimental.pallas import tpu as pltpu


def _round_up(x, m):
    return ((x + m - 1) // m) * m


def _clamp_vmem(nbytes):
    # Footprint-derived VMEM request with headroom, capped well below the 64 MiB
    # physical per-TensorCore VMEM of v7x (never ask for the whole chip).
    return int(min(max(nbytes, 16 * 1024 * 1024), 48 * 1024 * 1024))


def _default_max_tiles():
    # tile_nb=128 keeps the three DP operand tiles register-resident (3 x 16 vregs
    # < 64) and the per-cell store under v5e's single vst slot; v6e's 2 vst slots
    # and 128 MiB VMEM tolerate a wider b tile (fewer grid steps, denser stores).
    try:
        kind = jax.devices()[0].device_kind.lower()
    except Exception:  # pragma: no cover - defensive
        kind = ""
    if "v6" in kind:
        return 128, 512
    return 128, 128


# --------------------------------------------------------------------------- #
# Kernel 1: tanh + L2 normalize (torch.nn.functional.normalize, p=2, eps=1e-12),
# done once per input (not once per main-kernel grid tile).  `axis` selects the
# feature axis to reduce over (last axis for a's (F, N, D) layout, middle axis
# for b's K-major (F, D, N) layout).
# --------------------------------------------------------------------------- #
def _prep_kernel(x_ref, o_ref, *, axis):
    x = x_ref[...].astype(jnp.float32)
    t = jnp.tanh(x)                                     # EUP
    ss = jnp.sum(t * t, axis=axis, keepdims=True)       # XLU reduce
    inv_norm = jax.lax.rsqrt(jnp.maximum(ss, 1e-24))    # == 1 / max(||t||, 1e-12)
    o_ref[...] = (t * inv_norm).astype(o_ref.dtype)


def _prep_a(x_fm, tile_n, out_dtype):
    f, n_p, d = x_fm.shape
    blk = f * tile_n * d * 4
    return pl.pallas_call(
        functools.partial(_prep_kernel, axis=2),
        out_shape=jax.ShapeDtypeStruct((f, n_p, d), out_dtype),
        grid_spec=pltpu.PrefetchScalarGridSpec(
            num_scalar_prefetch=0,
            grid=(n_p // tile_n,),
            in_specs=[pl.BlockSpec((f, tile_n, d), lambda i: (0, i, 0))],
            out_specs=pl.BlockSpec((f, tile_n, d), lambda i: (0, i, 0)),
        ),
        compiler_params=pltpu.CompilerParams(
            dimension_semantics=("parallel",),
            vmem_limit_bytes=_clamp_vmem(4 * blk + (8 << 20))),
    )(x_fm)


def _prep_b(x_km, tile_n, out_dtype):
    f, d, n_p = x_km.shape
    blk = f * d * tile_n * 4
    return pl.pallas_call(
        functools.partial(_prep_kernel, axis=1),
        out_shape=jax.ShapeDtypeStruct((f, d, n_p), out_dtype),
        grid_spec=pltpu.PrefetchScalarGridSpec(
            num_scalar_prefetch=0,
            grid=(n_p // tile_n,),
            in_specs=[pl.BlockSpec((f, d, tile_n), lambda i: (0, 0, i))],
            out_specs=pl.BlockSpec((f, d, tile_n), lambda i: (0, 0, i)),
        ),
        compiler_params=pltpu.CompilerParams(
            dimension_semantics=("parallel",),
            vmem_limit_bytes=_clamp_vmem(4 * blk + (8 << 20))),
    )(x_km)


# --------------------------------------------------------------------------- #
# Kernel 2: per (a-tile, b-tile) — one batched MXU matmul per b frame (column),
# interleaved with the column-major unrolled DP on a rolling column of tiles.
# --------------------------------------------------------------------------- #
def _dms_kernel(a_ref, b_ref, o_ref, *, frame_num):
    f = frame_num
    tile_na = a_ref.shape[1]
    d = a_ref.shape[2]

    # (F, tile_na, D) -> (F*tile_na, D): leading-dim merge; tile_na is a sublane
    # multiple so this is a layout no-op.
    a_flat = a_ref[...].reshape(f * tile_na, d)

    def col_locals(j):
        # One matmul per column: (F*tile_na, D) x (D, tile_nb) -> (F*tile_na, tile_nb).
        # b is already K-major, so the MXU RHS needs no transpose/relayout.
        return jax.lax.dot_general(
            a_flat, b_ref[j],
            dimension_numbers=(((1,), (0,)), ((), ())),
            preferred_element_type=jnp.float32)

    # Column-major DP over the (F+1, F+1) grid; only one rolling column of tiles
    # (plus the column being built) is live.  The next column's matmul is issued
    # before the current column's DP so the MXU work overlaps the VALU-bound DP.
    locals_j = col_locals(0)
    prev_col = None                       # boundary column j = 0 (all zeros)
    for j in range(1, f + 1):
        cur_locals = locals_j
        if j < f:
            locals_j = col_locals(j)      # issue next column one step ahead
        cur_col = [None]                  # index 0 = boundary row i = 0 (zero)
        for i in range(1, f + 1):
            local = cur_locals[(i - 1) * tile_na:i * tile_na, :]
            step = float(max(i, j))
            if i == 1 and j == 1:
                # best = 0, step = 1  ->  cell value is exactly the local sim.
                cur_col.append(local)
                continue
            if j == 1:                    # left/diag are the zero boundary
                best = jnp.maximum(cur_col[i - 1], 0.0)
            elif i == 1:                  # up/diag are the zero boundary
                best = jnp.maximum(prev_col[1], 0.0)
            else:
                best = jnp.maximum(jnp.maximum(prev_col[i], cur_col[i - 1]),
                                   prev_col[i - 1])
            # (best*(step-1) + local) / step with the divide folded into a
            # trace-time reciprocal (max commutes with the monotone affine map).
            cur_col.append((best * (step - 1.0) + local) * (1.0 / step))
        prev_col = cur_col

    o_ref[...] = prev_col[f].astype(o_ref.dtype)


def dynamic_max_similarity(a, b, frame_num, *, use_bf16=True,
                           max_tile_na=None, max_tile_nb=None):
    """a: (Na, frame_num, D), b: (Nb, frame_num, D) -> (Na, Nb)."""
    na, fa, d = a.shape
    nb, fb, db = b.shape
    assert fa == frame_num and fb == frame_num and d == db

    dflt_na, dflt_nb = _default_max_tiles()
    max_tile_na = max_tile_na or dflt_na
    max_tile_nb = max_tile_nb or dflt_nb

    # Tile sizes: sublane-aligned a-item tiles, lane-dense (multiple of 128)
    # b-item tiles -> aligned matmul results and unmasked output stores.
    tile_na = min(_round_up(na, 8), max_tile_na)
    tile_nb = min(_round_up(nb, 128), max_tile_nb)
    # Prefer >=2 grid cells on a parallel axis when the problem allows it so
    # v7x's two TensorCores both get work (split along nb, keep lane density).
    if (_round_up(na, tile_na) == tile_na and _round_up(nb, tile_nb) == tile_nb
            and tile_nb > 128 and _round_up(nb, 128) >= 2 * 128):
        tile_nb = 128
    na_p = _round_up(na, tile_na)
    nb_p = _round_up(nb, tile_nb)

    # Padded items are zero vectors: tanh(0)=0 hits the eps clamp (no NaN),
    # contributes sim=0, and the padded output rows/cols are sliced off below.
    op_dtype = jnp.bfloat16 if use_bf16 else jnp.float32
    a_fm = jnp.transpose(a, (1, 0, 2))                      # (F, Na, D)
    if na_p > na:
        a_fm = jnp.pad(a_fm, ((0, 0), (0, na_p - na), (0, 0)))
    b_km = jnp.transpose(b, (1, 2, 0))                      # (F, D, Nb)  K-major
    if nb_p > nb:
        b_km = jnp.pad(b_km, ((0, 0), (0, 0), (0, nb_p - nb)))

    a_n = _prep_a(a_fm, tile_na, op_dtype)
    b_n = _prep_b(b_km, tile_nb, op_dtype)

    # Footprint-derived VMEM request (double-buffered blocks + DP/locals scratch).
    op_isz = jnp.dtype(op_dtype).itemsize
    out_isz = jnp.dtype(a.dtype).itemsize
    a_blk = frame_num * tile_na * d * op_isz
    b_blk = frame_num * d * tile_nb * op_isz
    out_blk = tile_na * tile_nb * out_isz
    dp_live = (2 * (frame_num + 1) + 2 * frame_num) * tile_na * tile_nb * 4
    main_vmem = _clamp_vmem(2 * (a_blk + b_blk + out_blk) + dp_live + (8 << 20))

    kernel = functools.partial(_dms_kernel, frame_num=frame_num)
    out_p = pl.pallas_call(
        kernel,
        out_shape=jax.ShapeDtypeStruct((na_p, nb_p), a.dtype),
        grid_spec=pltpu.PrefetchScalarGridSpec(
            num_scalar_prefetch=0,
            grid=(na_p // tile_na, nb_p // tile_nb),
            in_specs=[
                pl.BlockSpec((frame_num, tile_na, d), lambda i, j: (0, i, 0)),
                pl.BlockSpec((frame_num, d, tile_nb), lambda i, j: (0, 0, j)),
            ],
            out_specs=pl.BlockSpec((tile_na, tile_nb), lambda i, j: (i, j)),
        ),
        compiler_params=pltpu.CompilerParams(
            dimension_semantics=("parallel", "parallel"),
            vmem_limit_bytes=main_vmem),
    )(a_n, b_n)

    return out_p[:na, :nb]


def _reference(a, b, frame_num):
    """Pure-JAX transcription of the PyTorch forward (for verification)."""
    na, f, d = a.shape
    nb = b.shape[0]
    x = jnp.tanh(a.reshape(-1, d))
    y = jnp.tanh(b.reshape(-1, d))
    x = x / jnp.maximum(jnp.sqrt(jnp.sum(x * x, -1, keepdims=True)), 1e-12)
    y = y / jnp.maximum(jnp.sqrt(jnp.sum(y * y, -1, keepdims=True)), 1e-12)
    sim = (x @ y.T).reshape(na, f, nb, f).transpose(0, 2, 1, 3)
    si = jnp.zeros((na, nb, f + 1, f + 1), a.dtype)
    for i in range(1, f + 1):
        for j in range(1, f + 1):
            local = sim[:, :, i - 1, j - 1]
            step = float(max(i, j))
            cand = jnp.stack(
                [(si[:, :, i - 1, j] * (step - 1.0) + local) / step,
                 (si[:, :, i, j - 1] * (step - 1.0) + local) / step,
                 (si[:, :, i - 1, j - 1] * (step - 1.0) + local) / step],
                axis=-1)
            si = si.at[:, :, i, j].set(jnp.max(cand, axis=-1))
    return si[:, :, -1, -1]


if __name__ == "__main__":
    configs = [
        dict(frame_num=8, na=2, nb=3, d=32),
        dict(frame_num=4, na=9, nb=5, d=16),
    ]
    key = jax.random.PRNGKey(0)
    for cfg in configs:
        key, ka, kb = jax.random.split(key, 3)
        a = jax.random.normal(ka, (cfg["na"], cfg["frame_num"], cfg["d"]),
                              dtype=jnp.float32)
        b = jax.random.normal(kb, (cfg["nb"], cfg["frame_num"], cfg["d"]),
                              dtype=jnp.float32)

        ref = jax.block_until_ready(_reference(a, b, cfg["frame_num"]))

        # f32-operand path: tight tolerance.
        out_f32 = jax.block_until_ready(
            dynamic_max_similarity(a, b, cfg["frame_num"], use_bf16=False))
        assert out_f32.shape == (cfg["na"], cfg["nb"])
        assert jnp.allclose(out_f32, ref, atol=1e-4, rtol=1e-4), (out_f32, ref)

        # bf16 MXU-operand path (default): loosened tolerance for the cast.
        out_bf16 = jax.block_until_ready(
            dynamic_max_similarity(a, b, cfg["frame_num"], use_bf16=True))
        assert out_bf16.shape == (cfg["na"], cfg["nb"])
        assert jnp.allclose(out_bf16, ref, atol=2e-2, rtol=2e-2), (out_bf16, ref)

    print("KERNEL_OK")
</pallas_src>

<mosaic_0001>
module attributes {stable_mosaic.version = 11 : i64} {
  func.func @_prep_kernel(%arg0: i32, %arg1: memref<8x8x32xf32, #tpu.memory_space<vmem>>, %arg2: memref<8x8x32xf32, #tpu.memory_space<vmem>>) attributes {dimension_semantics = [#tpu.dimension_semantics<parallel>], iteration_bounds = array<i64: 1>, scalar_prefetch = 0 : i64, scratch_operands = 0 : i64, tpu.core_type = #tpu.core_type<tc>, window_params = [{transform_indices = @transform_0, window_bounds = array<i64: 8, 8, 32>}, {transform_indices = @transform_1, window_bounds = array<i64: 8, 8, 32>}]} {
    %c0 = arith.constant 0 : index
    %c0_0 = arith.constant 0 : index
    %c0_1 = arith.constant 0 : index
    %0 = vector.load %arg1[%c0, %c0_0, %c0_1] : memref<8x8x32xf32, #tpu.memory_space<vmem>>, vector<8x8x32xf32>
    %1 = math.tanh %0 : vector<8x8x32xf32>
    %2 = arith.mulf %1, %1 : vector<8x8x32xf32>
    %cst = arith.constant dense<0.000000e+00> : vector<8x8xf32>
    %3 = vector.multi_reduction <add>, %2, %cst [2] : vector<8x8x32xf32> to vector<8x8xf32>
    %4 = vector.shape_cast %3 : vector<8x8xf32> to vector<8x8x1xf32>
    %cst_2 = arith.constant 1.000000e-24 : f32
    %5 = vector.broadcast %cst_2 : f32 to vector<8x8x1xf32>
    %6 = arith.maximumf %4, %5 : vector<8x8x1xf32>
    %7 = math.rsqrt %6 : vector<8x8x1xf32>
    %8 = vector.broadcast %7 : vector<8x8x1xf32> to vector<8x8x32xf32>
    %9 = arith.mulf %1, %8 : vector<8x8x32xf32>
    %c0_3 = arith.constant 0 : index
    %c0_4 = arith.constant 0 : index
    %c0_5 = arith.constant 0 : index
    %10 = vector.load %arg2[%c0_3, %c0_4, %c0_5] : memref<8x8x32xf32, #tpu.memory_space<vmem>>, vector<8x8x32xf32>
    tpu.vector_store %arg2[%c0_3, %c0_4, %c0_5], %9 {strides = array<i32>} : memref<8x8x32xf32, #tpu.memory_space<vmem>>, vector<8x8x32xf32>,
    return
  }
  func.func @transform_0(%arg0: i32) -> (i32, i32, i32) {
    %c0_i32 = arith.constant 0 : i32
    %c0_i32_0 = arith.constant 0 : i32
    %c0_i32_1 = arith.constant 0 : i32
    return %c0_i32, %arg0, %c0_i32_0 : i32, i32, i32
  }
  func.func @transform_1(%arg0: i32) -> (i32, i32, i32) {
    %c0_i32 = arith.constant 0 : i32
    %c0_i32_0 = arith.constant 0 : i32
    %c0_i32_1 = arith.constant 0 : i32
    return %c0_i32, %arg0, %c0_i32_0 : i32, i32, i32
  }
}

</mosaic_0001>

<llo_original>
// kernel: tpu_custom_call.1
$region0: #{tpu_custom_call.1}
  #allocation0 [shape = 'u32[]', space=smem, size = 0x4, offset = 0x4, fixed_abs, tag = 'smem constant byte address 0x4 - core index']
  #allocation1 [shape = 'u32[144,128]{1,0:T(1,128)}', space=vmem, size = 0x12000, scoped, tag = 'internal scratch']
  %s0 = inlined_call_operand.hbm [shape: f32[8,8,32], index: 0, kind: input, shape index: {}]
  %s1 = inlined_call_operand.hbm [shape: f32[8,8,32], index: 1, kind: output, shape index: {}]
  %s2 = sld [smem:[#allocation0]]
  $region18: #{tpu_custom_call.1} parent=0
    _
  %s4 = ssub.s32 1, %s2
  %s5 = scalar_select 0, %s4, %s2
  $region1: #{tpu_custom_call.1} parent=0
    #allocation2 [shape = 'u8[32768]{0}', space=vmem, size = 0x8000, scoped, tag = 'input window, operand 0, single buffered']
    #allocation3 [shape = 's32[1]{0}', space=sflag, size = 0x4, scoped, tag = 'scoped memory for tpu_custom_call.1']
    #allocation4 [shape = 's32[1]{0}', space=sflag, size = 0x4, scoped, tag = 'scoped memory for tpu_custom_call.1']
    #allocation5 [shape = 'u8[32768]{0}', space=vmem, size = 0x8000, scoped, tag = 'output window, operand 0, single buffered']
    %6 = vsyncpa [#allocation3], 0
    %7 = vsyncpa [#allocation4], 0
    // Predicated region
    $region2: #{tpu_custom_call.1} parent=1 // pred_check
      _
    $region3: #{tpu_custom_call.1} parent=1 // pred_check_branch
      %9 = sbr.rel (0) target = $region5
    $region4: #{tpu_custom_call.1} parent=1 // pred_region
      %s11 = ssub.s32 1024, 1024
      %12 = vsyncadd [#allocation3], %s11
      %s13 = sshll.u32 [#allocation2], 4
      %s14 = int_to_ptr.vmem [resolvable:$true] %s13
      %19 = dma.hbm_to_vmem [thread:$0]  %s0, 1024, %s14, [#allocation3], 128, 128, 8
    $region5: #{tpu_custom_call.1} parent=1 // pred_fallthru
      _
    // Predicated region
    $region6: #{tpu_custom_call.1} parent=1 // pred_check
      _
    $region7: #{tpu_custom_call.1} parent=1 // pred_check_branch
      %21 = sbr.rel (0) target = $region9
    $region8: #{tpu_custom_call.1} parent=1 // pred_region
      %22 = dma.done [#allocation3], 1024
    $region9: #{tpu_custom_call.1} parent=1 // pred_fallthru
      _
    %v23 = vld [vmem:[#allocation2] sm:$0xff]
    %v24 = vld [vmem:[#allocation2 + $0x8] sm:$0xff]
    %v25 = vld [vmem:[#allocation2 + $0x10] sm:$0xff]
    %v26 = vld [vmem:[#allocation2 + $0x18] sm:$0xff]
    %v27 = vld [vmem:[#allocation2 + $0x20] sm:$0xff]
    %v28 = vld [vmem:[#allocation2 + $0x28] sm:$0xff]
    %v29 = vld [vmem:[#allocation2 + $0x30] sm:$0xff]
    %v30 = vld [vmem:[#allocation2 + $0x38] sm:$0xff]
    %v31 = vtanh.pop %v23
    %v32 = vtanh.pop %v24
    %v33 = vtanh.pop %v25
    %v34 = vtanh.pop %v26
    %v35 = vtanh.pop %v27
    %v36 = vtanh.pop %v28
    %v37 = vtanh.pop %v29
    %v38 = vtanh.pop %v30
    %v39 = vmul.f32 %v31, %v31
    %v40 = vmul.f32 %v32, %v32
    %v41 = vmul.f32 %v33, %v33
    %v42 = vmul.f32 %v34, %v34
    %v43 = vmul.f32 %v35, %v35
    %v44 = vmul.f32 %v36, %v36
    %v45 = vmul.f32 %v37, %v37
    %v46 = vmul.f32 %v38, %v38
    %vm47 = vcmask 261120
    %v48 = vsel %vm47, %v39, 0.0
    %49 = vadd.xlane.f32.xlu0 %v48
    %v50 = vpop.xlane.xlu0 %49
    %v51 = vsel %vm47, %v40, 0.0
    %52 = vadd.xlane.f32.xlu0 %v51
    %v53 = vpop.xlane.xlu0 %52
    %v54 = vsel %vm47, %v41, 0.0
    %55 = vadd.xlane.f32.xlu0 %v54
    %v56 = vpop.xlane.xlu0 %55
    %v57 = vsel %vm47, %v42, 0.0
    %58 = vadd.xlane.f32.xlu0 %v57
    %v59 = vpop.xlane.xlu0 %58
    %v60 = vsel %vm47, %v43, 0.0
    %61 = vadd.xlane.f32.xlu0 %v60
    %v62 = vpop.xlane.xlu0 %61
    %v63 = vsel %vm47, %v44, 0.0
    %64 = vadd.xlane.f32.xlu0 %v63
    %v65 = vpop.xlane.xlu0 %64
    %v66 = vsel %vm47, %v45, 0.0
    %67 = vadd.xlane.f32.xlu0 %v66
    %v68 = vpop.xlane.xlu0 %67
    %v69 = vsel %vm47, %v46, 0.0
    %70 = vadd.xlane.f32.xlu0 %v69
    %v71 = vpop.xlane.xlu0 %70
    %v72 = vmax.f32 %v50, 1e-24
    %v73 = vmax.f32 %v53, 1e-24
    %v74 = vmax.f32 %v56, 1e-24
    %v75 = vmax.f32 %v59, 1e-24
    %v76 = vmax.f32 %v62, 1e-24
    %v77 = vmax.f32 %v65, 1e-24
    %v78 = vmax.f32 %v68, 1e-24
    %v79 = vmax.f32 %v71, 1e-24
    %v80 = vrsqrt.pop %v72
    %v81 = vrsqrt.pop %v73
    %v82 = vrsqrt.pop %v74
    %v83 = vrsqrt.pop %v75
    %v84 = vrsqrt.pop %v76
    %v85 = vrsqrt.pop %v77
    %v86 = vrsqrt.pop %v78
    %v87 = vrsqrt.pop %v79
    %v88 = vmul.f32 %v31, %v80
    %v89 = vmul.f32 %v32, %v81
    %v90 = vmul.f32 %v33, %v82
    %v91 = vmul.f32 %v34, %v83
    %v92 = vmul.f32 %v35, %v84
    %v93 = vmul.f32 %v36, %v85
    %v94 = vmul.f32 %v37, %v86
    %v95 = vmul.f32 %v38, %v87
    %96 = vst.msk [vmem:[#allocation5] sm:$0xff] %vm47, %v88
    %97 = vst.msk [vmem:[#allocation5 + $0x8] sm:$0xff] %vm47, %v89
    %98 = vst.msk [vmem:[#allocation5 + $0x10] sm:$0xff] %vm47, %v90
    %99 = vst.msk [vmem:[#allocation5 + $0x18] sm:$0xff] %vm47, %v91
    %100 = vst.msk [vmem:[#allocation5 + $0x20] sm:$0xff] %vm47, %v92
    %101 = vst.msk [vmem:[#allocation5 + $0x28] sm:$0xff] %vm47, %v93
    %102 = vst.msk [vmem:[#allocation5 + $0x30] sm:$0xff] %vm47, %v94
    %103 = vst.msk [vmem:[#allocation5 + $0x38] sm:$0xff] %vm47, %v95
    // Predicated region
    $region10: #{tpu_custom_call.1} parent=1 // pred_check
      _
    $region11: #{tpu_custom_call.1} parent=1 // pred_check_branch
      %105 = sbr.rel (0) target = $region13
    $region12: #{tpu_custom_call.1} parent=1 // pred_region
      %s107 = ssub.s32 1024, 1024
      %108 = vsyncadd [#allocation4], %s107
      %s109 = sshll.u32 [#allocation5], 4
      %s110 = int_to_ptr.vmem [resolvable:$true] %s109
      %115 = dma.vmem_to_hbm [thread:$0]  %s110, 1024, %s1, [#allocation4], 128, 128, 8
    $region13: #{tpu_custom_call.1} parent=1 // pred_fallthru
      _
    // Predicated region
    $region14: #{tpu_custom_call.1} parent=1 // pred_check
      _
    $region15: #{tpu_custom_call.1} parent=1 // pred_check_branch
      %117 = sbr.rel (0) target = $region17
    $region16: #{tpu_custom_call.1} parent=1 // pred_region
      %118 = dma.done [#allocation4], 1024
    $region17: #{tpu_custom_call.1} parent=1 // pred_fallthru
      _
    %119 = vsyncpa [#allocation3], 1
    %120 = vsyncpa [#allocation4], 1

</llo_original>
